<compile_context>
chip_gen: v7x
topology: tpu7x:2x2x1
jax: 0.10.0
libtpu: 0.0.40
codegen_flags: <defaults>
</compile_context>

<pallas_src>
import jax
import jax.numpy as jnp
from jax.experimental import pallas as pl
from jax.experimental.pallas import tpu as pltpu

NUM_LAYERS = 10
FEAT = 10


def _round_up(a, m):
    return ((a + m - 1) // m) * m


def mymodule_kernel(x_ref, w_ref, b_ref, o_ref):
    # x_ref : (tb, FEAT)    f32 batch tile
    # w_ref : (FEAT, FEAT)  f32 effective weight in "x @ W" layout
    # b_ref : (1, FEAT)     f32 effective bias
    o_ref[...] = (
        jnp.dot(x_ref[...], w_ref[...], preferred_element_type=jnp.float32)
        + b_ref[...]
    ).astype(o_ref.dtype)


def prepare_params(weights, biases):
    """One-time (batch-independent) collapse of the whole affine chain.

    weights: (10, 10, 10) in PyTorch layout W[out, in]; biases: (10, 10).
    Returns (W_eff (10,10), b_eff (1,10)) such that
    forward(x) == x @ W_eff + b_eff.
    """
    weights = weights.astype(jnp.float32)
    biases = biases.astype(jnp.float32)
    m = jnp.eye(FEAT, dtype=jnp.float32)        # composed right-multiply matrix
    v = jnp.zeros((FEAT,), dtype=jnp.float32)   # composed bias
    for i in range(NUM_LAYERS):
        j = i // 2
        a_t = (weights[j] + weights[i]).T       # (in, out): step does x @ a_t + c
        c = biases[j] + biases[i]
        m = m @ a_t
        v = v @ a_t + c
    return m, v.reshape(1, FEAT)


def mymodule_forward(x, w_eff, b_eff, *, tb_max=16384):
    """x: (B, 10). Returns (B, 10) == PyTorch MyModule.forward(x)."""
    B, F = x.shape
    assert F == FEAT
    x = x.astype(jnp.float32)

    if B < 16:
        # Single tile: block dims equal full array dims, so no sublane
        # rounding, no wrapper pad, no output slice.
        tb = B
    else:
        # >=2 grid points so v7x's two TensorCores both get work; tile is a
        # multiple of 8 sublanes and capped so (tb,10) f32 blocks stay far
        # under VMEM limits on every generation.
        tb = min(_round_up(pl.cdiv(B, 2), 8), tb_max)

    b_total = _round_up(B, tb)
    if b_total != B:
        xp = jnp.zeros((b_total, FEAT), jnp.float32).at[:B].set(x)
    else:
        xp = x

    out = pl.pallas_call(
        mymodule_kernel,
        out_shape=jax.ShapeDtypeStruct((b_total, FEAT), jnp.float32),
        grid_spec=pltpu.PrefetchScalarGridSpec(
            num_scalar_prefetch=0,
            grid=(b_total // tb,),
            in_specs=[
                pl.BlockSpec((tb, FEAT), lambda i: (i, 0)),
                pl.BlockSpec((FEAT, FEAT), lambda i: (0, 0)),
                pl.BlockSpec((1, FEAT), lambda i: (0, 0)),
            ],
            out_specs=pl.BlockSpec((tb, FEAT), lambda i: (i, 0)),
        ),
        compiler_params=pltpu.CompilerParams(
            dimension_semantics=("parallel",)  # v7x: shard batch across 2 TCs
        ),
    )(xp, w_eff, b_eff)

    if b_total != B:
        out = out[:B]
    return out


def init_params(key):
    """Deterministic init mimicking PyTorch nn.Linear default:
    U(-1/sqrt(in_features), 1/sqrt(in_features))."""
    kw, kb = jax.random.split(key)
    bound = 1.0 / jnp.sqrt(jnp.float32(FEAT))
    weights = jax.random.uniform(
        kw, (NUM_LAYERS, FEAT, FEAT), jnp.float32, -bound, bound
    )
    biases = jax.random.uniform(kb, (NUM_LAYERS, FEAT), jnp.float32, -bound, bound)
    return weights, biases


def reference_forward(x, weights, biases):
    """Pure-JAX reference of the PyTorch forward (unfused, step by step)."""
    for i in range(NUM_LAYERS):
        j = i // 2
        x = (x @ weights[j].T + biases[j]) + (x @ weights[i].T + biases[i])
    return x


if __name__ == "__main__":
    key = jax.random.PRNGKey(0)
    kx, kp = jax.random.split(key)

    batch = 4
    x = jax.random.normal(kx, (batch, FEAT), jnp.float32)
    weights, biases = init_params(kp)

    # One-time param preparation (hoisted out of the forward path).
    w_eff, b_eff = prepare_params(weights, biases)
    w_eff, b_eff = jax.block_until_ready((w_eff, b_eff))

    out = mymodule_forward(x, w_eff, b_eff)
    out = jax.block_until_ready(out)

    ref = reference_forward(x, weights, biases)
    assert out.shape == (batch, FEAT)
    assert jnp.allclose(out, ref, rtol=1e-4, atol=1e-4), (
        f"max abs diff = {jnp.max(jnp.abs(out - ref))}"
    )

    print("KERNEL_OK")
</pallas_src>

<mosaic_0001>
module attributes {stable_mosaic.version = 11 : i64} {
  func.func @mymodule_kernel(%arg0: i32, %arg1: memref<4x10xf32, #tpu.memory_space<vmem>>, %arg2: memref<10x10xf32, #tpu.memory_space<vmem>>, %arg3: memref<1x10xf32, #tpu.memory_space<vmem>>, %arg4: memref<4x10xf32, #tpu.memory_space<vmem>>) attributes {dimension_semantics = [#tpu.dimension_semantics<parallel>], iteration_bounds = array<i64: 1>, scalar_prefetch = 0 : i64, scratch_operands = 0 : i64, tpu.core_type = #tpu.core_type<tc>, window_params = [{transform_indices = @transform_0, window_bounds = array<i64: 4, 10>}, {pipeline_mode = #tpu.pipeline_mode<synchronous>, transform_indices = @transform_1, window_bounds = array<i64: 10, 10>}, {pipeline_mode = #tpu.pipeline_mode<synchronous>, transform_indices = @transform_2, window_bounds = array<i64: 1, 10>}, {transform_indices = @transform_3, window_bounds = array<i64: 4, 10>}]} {
    %c0 = arith.constant 0 : index
    %c0_0 = arith.constant 0 : index
    %0 = vector.load %arg1[%c0, %c0_0] : memref<4x10xf32, #tpu.memory_space<vmem>>, vector<4x10xf32>
    %c0_1 = arith.constant 0 : index
    %c0_2 = arith.constant 0 : index
    %1 = vector.load %arg2[%c0_1, %c0_2] : memref<10x10xf32, #tpu.memory_space<vmem>>, vector<10x10xf32>
    %cst = arith.constant dense<0.000000e+00> : vector<4x10xf32>
    %2 = tpu.matmul %0, %1, %cst {dimension_numbers = #tpu.dot_dimension_numbers<[1], [0], [0], [1], [0, 0, 1, 1], [], []>} : vector<4x10xf32>, vector<10x10xf32>, vector<4x10xf32> -> vector<4x10xf32>
    %c0_3 = arith.constant 0 : index
    %c0_4 = arith.constant 0 : index
    %3 = vector.load %arg3[%c0_3, %c0_4] : memref<1x10xf32, #tpu.memory_space<vmem>>, vector<1x10xf32>
    %4 = vector.broadcast %3 : vector<1x10xf32> to vector<4x10xf32>
    %5 = arith.addf %2, %4 : vector<4x10xf32>
    %c0_5 = arith.constant 0 : index
    %c0_6 = arith.constant 0 : index
    %6 = vector.load %arg4[%c0_5, %c0_6] : memref<4x10xf32, #tpu.memory_space<vmem>>, vector<4x10xf32>
    tpu.vector_store %arg4[%c0_5, %c0_6], %5 {strides = array<i32>} : memref<4x10xf32, #tpu.memory_space<vmem>>, vector<4x10xf32>,
    return
  }
  func.func @transform_0(%arg0: i32) -> (i32, i32) {
    %c0_i32 = arith.constant 0 : i32
    %c0_i32_0 = arith.constant 0 : i32
    return %arg0, %c0_i32 : i32, i32
  }
  func.func @transform_1(%arg0: i32) -> (i32, i32) {
    %c0_i32 = arith.constant 0 : i32
    %c0_i32_0 = arith.constant 0 : i32
    %c0_i32_1 = arith.constant 0 : i32
    return %c0_i32, %c0_i32_0 : i32, i32
  }
  func.func @transform_2(%arg0: i32) -> (i32, i32) {
    %c0_i32 = arith.constant 0 : i32
    %c0_i32_0 = arith.constant 0 : i32
    %c0_i32_1 = arith.constant 0 : i32
    return %c0_i32, %c0_i32_0 : i32, i32
  }
  func.func @transform_3(%arg0: i32) -> (i32, i32) {
    %c0_i32 = arith.constant 0 : i32
    %c0_i32_0 = arith.constant 0 : i32
    return %arg0, %c0_i32 : i32, i32
  }
}

</mosaic_0001>

<llo_original>
// kernel: tpu_custom_call.1
$region0: #{tpu_custom_call.1}
  #allocation0 [shape = 'u32[]', space=smem, size = 0x4, offset = 0x4, fixed_abs, tag = 'smem constant byte address 0x4 - core index']
  #allocation1 [shape = 'u32[144,128]{1,0:T(1,128)}', space=vmem, size = 0x12000, scoped, tag = 'internal scratch']
  %s0 = inlined_call_operand.hbm [shape: f32[4,10], index: 0, kind: input, shape index: {}]
  %s1 = inlined_call_operand.hbm [shape: f32[10,10], index: 1, kind: input, shape index: {}]
  %s2 = inlined_call_operand.vmem [shape: f32[1,10], index: 2, kind: input, shape index: {}]
  %s3 = inlined_call_operand.hbm [shape: f32[4,10], index: 3, kind: output, shape index: {}]
  %s4 = sld [smem:[#allocation0]]
  $region30: #{tpu_custom_call.1} parent=0
    _
  %s6 = ssub.s32 1, %s4
  %s7 = scalar_select 0, %s6, %s4
  $region1: #{tpu_custom_call.1} parent=0
    #allocation2 [shape = 'u8[2048]{0}', space=vmem, size = 0x800, scoped, tag = 'input window, operand 0, single buffered']
    #allocation3 [shape = 's32[1]{0}', space=sflag, size = 0x4, scoped, tag = 'scoped memory for tpu_custom_call.1']
    #allocation4 [shape = 's32[1]{0}', space=sflag, size = 0x4, scoped, tag = 'scoped memory for tpu_custom_call.1']
    #allocation5 [shape = 'u8[8192]{0}', space=vmem, size = 0x2000, scoped, tag = 'input window, operand 1, single buffered']
    #allocation6 [shape = 's32[1]{0}', space=sflag, size = 0x4, scoped, tag = 'scoped memory for tpu_custom_call.1']
    #allocation7 [shape = 'u8[2048]{0}', space=vmem, size = 0x800, scoped, tag = 'output window, operand 0, single buffered']
    %8 = vsyncpa [#allocation3], 0
    %9 = vsyncpa [#allocation6], 0
    %10 = vsyncpa [#allocation4], 0
    // Predicated region
    $region2: #{tpu_custom_call.1} parent=1 // pred_check
      _
    $region3: #{tpu_custom_call.1} parent=1 // pred_check_branch
      %12 = sbr.rel (0) target = $region5
    $region4: #{tpu_custom_call.1} parent=1 // pred_region
      %s14 = ssub.s32 64, 64
      %15 = vsyncadd [#allocation3], %s14
      %s17 = sshll.u32 [#allocation2], 4
      %s18 = int_to_ptr.vmem [resolvable:$true] %s17
      %20 = dma.hbm_to_vmem [thread:$0]  %s0, 64, %s18, [#allocation3]
    $region5: #{tpu_custom_call.1} parent=1 // pred_fallthru
      _
    // Predicated region
    $region6: #{tpu_custom_call.1} parent=1 // pred_check
      _
    $region7: #{tpu_custom_call.1} parent=1 // pred_check_branch
      %22 = sbr.rel (0) target = $region9
    $region8: #{tpu_custom_call.1} parent=1 // pred_region
      %s24 = ssub.s32 256, 256
      %25 = vsyncadd [#allocation6], %s24
      %s26 = sshll.u32 [#allocation5], 4
      %s27 = int_to_ptr.vmem [resolvable:$true] %s26
      %32 = dma.hbm_to_vmem [thread:$0]  %s1, 256, %s27, [#allocation6], 128, 128, 8
    $region9: #{tpu_custom_call.1} parent=1 // pred_fallthru
      _
    // Predicated region
    $region10: #{tpu_custom_call.1} parent=1 // pred_check
      _
    $region11: #{tpu_custom_call.1} parent=1 // pred_check_branch
      %34 = sbr.rel (0) target = $region13
    $region12: #{tpu_custom_call.1} parent=1 // pred_region
      _
    $region13: #{tpu_custom_call.1} parent=1 // pred_fallthru
      _
    // Predicated region
    $region14: #{tpu_custom_call.1} parent=1 // pred_check
      _
    $region15: #{tpu_custom_call.1} parent=1 // pred_check_branch
      %36 = sbr.rel (0) target = $region17
    $region16: #{tpu_custom_call.1} parent=1 // pred_region
      %37 = dma.done [#allocation3], 64
    $region17: #{tpu_custom_call.1} parent=1 // pred_fallthru
      _
    // Predicated region
    $region18: #{tpu_custom_call.1} parent=1 // pred_check
      _
    $region19: #{tpu_custom_call.1} parent=1 // pred_check_branch
      %39 = sbr.rel (0) target = $region21
    $region20: #{tpu_custom_call.1} parent=1 // pred_region
      %40 = dma.done [#allocation6], 256
    $region21: #{tpu_custom_call.1} parent=1 // pred_fallthru
      _
    %v41 = vld [vmem:[#allocation2] sm:$0xf]
    %v42 = vld [vmem:[#allocation5] sm:$0xff]
    %v43 = vld [vmem:[#allocation5 + $0x8] sm:$0x3]
    %v44 = vld [vmem:[%s2] sm:$0x1]
    %v46 = vlaneseq
    %v47 = vshrl.u32 %v46, 7
    %v48 = vsub.s32 0, %v47
    %v49 = vrot.slane %v44, %v48
    %vm51 = vcmask 80896
    %v53 = vsel %vm51, %v41, 0
    %vm55 = vcmask 1041408
    %v57 = vsel %vm55, %v43, 0
    %59 = vmatprep.subr.mxu0 0.0
    %60 = vmatpush1.msra.mxu0 %v42
    %61 = vmatprep.subr.mxu0 0.0
    %62 = vmatpush1.msra.mxu0 %v57
    %63 = vmatprep.subr.mxu0 0.0
    %64 = vmatpush1.msra.mxu0 0.0
    %65 = vmatprep.subr.mxu0 0.0
    %66 = vmatpush1.msra.mxu0 0.0
    %67 = vmatprep.subr.mxu0 0.0
    %68 = vmatpush1.msra.mxu0 0.0
    %69 = vmatprep.subr.mxu0 0.0
    %70 = vmatpush1.msra.mxu0 0.0
    %71 = vmatprep.subr.mxu0 0.0
    %72 = vmatpush1.msra.mxu0 0.0
    %73 = vmatprep.subr.mxu0 0.0
    %74 = vmatpush1.msra.mxu0 0.0
    %75 = vmatprep.subr.mxu0 0.0
    %76 = vmatpush1.msra.mxu0 0.0
    %77 = vmatprep.subr.mxu0 0.0
    %78 = vmatpush1.msra.mxu0 0.0
    %79 = vmatprep.subr.mxu0 0.0
    %80 = vmatpush1.msra.mxu0 0.0
    %81 = vmatprep.subr.mxu0 0.0
    %82 = vmatpush1.msra.mxu0 0.0
    %83 = vmatprep.subr.mxu0 0.0
    %84 = vmatpush1.msra.mxu0 0.0
    %85 = vmatprep.subr.mxu0 0.0
    %86 = vmatpush1.msra.mxu0 0.0
    %87 = vmatprep.subr.mxu0 0.0
    %88 = vmatpush1.msra.mxu0 0.0
    %89 = vmatprep.subr.mxu0 0.0
    %90 = vmatpush1.msra.mxu0 0.0
    %91 = vmatprep.subr.mxu0 0.0
    %92 = vmatpush1.msra.mxu0 0.0
    %93 = vmatprep.subr.mxu0 0.0
    %94 = vmatpush1.msra.mxu0 0.0
    %95 = vmatprep.subr.mxu0 0.0
    %96 = vmatpush1.msra.mxu0 0.0
    %97 = vmatprep.subr.mxu0 0.0
    %98 = vmatpush1.msra.mxu0 0.0
    %99 = vmatprep.subr.mxu0 0.0
    %100 = vmatpush1.msra.mxu0 0.0
    %101 = vmatprep.subr.mxu0 0.0
    %102 = vmatpush1.msra.mxu0 0.0
    %103 = vmatprep.subr.mxu0 0.0
    %104 = vmatpush1.msra.mxu0 0.0
    %105 = vmatprep.subr.mxu0 0.0
    %106 = vmatpush1.msra.mxu0 0.0
    %107 = vmatprep.subr.mxu0 0.0
    %108 = vmatpush1.msra.mxu0 0.0
    %109 = vmatprep.subr.mxu0 0.0
    %110 = vmatpush1.msra.mxu0 0.0
    %111 = vmatprep.subr.mxu0 0.0
    %112 = vmatpush1.msra.mxu0 0.0
    %113 = vmatprep.subr.mxu0 0.0
    %114 = vmatpush1.msra.mxu0 0.0
    %115 = vmatprep.subr.mxu0 0.0
    %116 = vmatpush1.msra.mxu0 0.0
    %117 = vmatprep.subr.mxu0 0.0
    %118 = vmatpush1.msra.mxu0 0.0
    %119 = vmatprep.subr.mxu0 0.0
    %120 = vmatpush1.msra.mxu0 0.0
    %121 = vmatprep.subr.mxu0 0.0
    %122 = vmatpush1.msra.mxu0 0.0
    %123 = vmatprep.mubr.f32.mxu0 0.0
    %124 = vmatmul.mubr.f32.gmra.mrb[0].mxu0 %v53
    %v125 = vpop.f32.mrb[0].mxu0
    %v126 = vadd.f32 %v49, %v125
    %v127 = vpop.f32.mrb[0].mxu0
    %128 = vdwg.mxu0
    %vm129 = vcmask 76800
    %130 = vst.msk [vmem:[#allocation7] sm:$0xf] %vm129, %v126
    // Predicated region
    $region22: #{tpu_custom_call.1} parent=1 // pred_check
      _
    $region23: #{tpu_custom_call.1} parent=1 // pred_check_branch
      %132 = sbr.rel (0) target = $region25
    $region24: #{tpu_custom_call.1} parent=1 // pred_region
      %s134 = ssub.s32 64, 64
      %135 = vsyncadd [#allocation4], %s134
      %s137 = sshll.u32 [#allocation7], 4
      %s138 = int_to_ptr.vmem [resolvable:$true] %s137
      %140 = dma.vmem_to_hbm [thread:$0]  %s138, 64, %s3, [#allocation4]
    $region25: #{tpu_custom_call.1} parent=1 // pred_fallthru
      _
    // Predicated region
    $region26: #{tpu_custom_call.1} parent=1 // pred_check
      _
    $region27: #{tpu_custom_call.1} parent=1 // pred_check_branch
      %142 = sbr.rel (0) target = $region29
    $region28: #{tpu_custom_call.1} parent=1 // pred_region
      %143 = dma.done [#allocation4], 64
    $region29: #{tpu_custom_call.1} parent=1 // pred_fallthru
      _
    %144 = vsyncpa [#allocation3], 1
    %145 = vsyncpa [#allocation6], 1
    %146 = vsyncpa [#allocation4], 1

</llo_original>
